<compile_context>
chip_gen: v7x
topology: tpu7x:2x2x1
jax: 0.10.0
libtpu: 0.0.40
codegen_flags: <defaults>
</compile_context>

<pallas_src>
import functools

import jax
import jax.numpy as jnp
from jax import lax
from jax.experimental import pallas as pl
from jax.experimental.pallas import tpu as pltpu

EPS = 1e-5
NEG_SLOPE = 0.2


# --------------------------- in-kernel helpers --------------------------------

def _conv_bn_lrelu(x, wmat, gamma, beta, masks, W, C):
    """x: (C, M) f32 activation, M = N*H*W on lanes.
    wmat: (C_out, 9*C_in) bf16, column index = (ky*3+kx)*C_in + ci.
    gamma/beta: (C, 1) f32.  masks: (is_h0, is_hlast, is_w0, is_wlast), (1, M) bool.
    """
    is_h0, is_hl, is_w0, is_wl = masks
    _, M = x.shape

    def shift_from(v, s):
        # y[m] = v[(m + s) % M]  (s is a static Python int)
        return pltpu.roll(v, (-s) % M, axis=1)

    # 3x3 reflect-padded row taps via lane rotations + boundary selects.
    x_up = shift_from(x, -W)                 # row h-1 (interior)
    x_dn = shift_from(x, +W)                 # row h+1 (interior)
    up = jnp.where(is_h0, x_dn, x_up)        # reflect: row -1 -> row 1
    down = jnp.where(is_hl, x_up, x_dn)      # reflect: row H  -> row H-2

    # Produce and consume taps one ky row group at a time: 3 accumulating
    # K=3C MXU matmuls instead of one K=9C matmul over a fully materialized
    # (9C, M) patch.  Bounds the live tap set to ~3 (C, M) arrays.
    y = None
    for ky, row in enumerate((up, x, down)):             # ky = 0, 1, 2
        r_l = shift_from(row, -1)                        # col w-1 (interior)
        r_r = shift_from(row, +1)                        # col w+1 (interior)
        left = jnp.where(is_w0, r_r, r_l)                # reflect: col -1 -> col 1
        right = jnp.where(is_wl, r_l, r_r)               # reflect: col W  -> col W-2
        slab = jnp.concatenate([left, row, right], axis=0).astype(jnp.bfloat16)  # (3C, M)
        w_k = wmat[:, ky * 3 * C:(ky + 1) * 3 * C]       # (C, 3C) static slice, bf16
        part = jnp.dot(w_k, slab, preferred_element_type=jnp.float32)            # (C, M) f32
        y = part if y is None else y + part

    # BatchNorm (training mode: batch stats, biased variance).  Variance is
    # computed around the mean for numerical stability; gamma*rsqrt folded
    # into one per-channel scale.
    inv_m = 1.0 / M
    mean = jnp.sum(y, axis=1, keepdims=True) * inv_m                 # (C, 1)
    d = y - mean
    var = jnp.sum(d * d, axis=1, keepdims=True) * inv_m              # (C, 1)
    scale = gamma * lax.rsqrt(var + EPS)                             # (C, 1)
    out = d * scale + beta
    return jnp.where(out > 0, out, NEG_SLOPE * out)                  # LeakyReLU(0.2)


def _resblock_kernel(x_ref, w1_ref, g1_ref, b1_ref,
                     w2_ref, g2_ref, b2_ref, o_ref, *, H, W, C):
    x = x_ref[...]                            # (C, M) f32

    # Boundary masks built in-kernel from an iota over the lane axis; H and W
    # are powers of two here so row/col indices are a shift and an AND (VPU,
    # essentially free).  (1, M) masks broadcast across sublanes in jnp.where.
    M = x.shape[1]
    m = lax.broadcasted_iota(jnp.int32, (1, M), 1)
    if (W & (W - 1)) == 0 and (H & (H - 1)) == 0:
        ww = m & (W - 1)
        hh = (m >> (W.bit_length() - 1)) & (H - 1)
    else:  # pragma: no cover - not exercised at the test shape
        ww = m % W
        hh = (m // W) % H
    masks = (hh == 0, hh == H - 1, ww == 0, ww == W - 1)   # computed once, reused

    h1 = _conv_bn_lrelu(x, w1_ref[...], g1_ref[...], b1_ref[...], masks, W, C)
    h2 = _conv_bn_lrelu(h1, w2_ref[...], g2_ref[...], b2_ref[...], masks, W, C)

    o_ref[...] = (x + h2).astype(o_ref.dtype)   # lane-dense (C, M) store


# ------------------------------ host wrapper -----------------------------------

def resblock_forward(x_nchw, w1, g1, b1, w2, g2, b2):
    """x_nchw: (N, C, H, W). w*: (C_out, C_in, 3, 3) PyTorch conv weights (bias=False)."""
    N, C, H, W = x_nchw.shape
    M = N * H * W

    # Lane-dense activation layout: channels on sublanes, flattened N*H*W on lanes.
    # TODO(synk): at real sizes keep x as (N, C, H*W) and grid over N/H bands to
    # avoid this extra HBM read+write outside the kernel.
    x_cm = jnp.transpose(x_nchw, (1, 0, 2, 3)).reshape(C, M).astype(jnp.float32)

    def to_wmat(w):  # torch (Co, Ci, 3, 3) -> (Co, 9*Ci), col = (ky*3+kx)*Ci + ci
        return jnp.transpose(w, (0, 2, 3, 1)).reshape(C, 9 * C).astype(jnp.bfloat16)

    kernel = functools.partial(_resblock_kernel, H=H, W=W, C=C)
    vm = pl.BlockSpec(memory_space=pltpu.MemorySpace.VMEM)
    out_cm = pl.pallas_call(
        kernel,
        out_shape=jax.ShapeDtypeStruct((C, M), x_nchw.dtype),
        in_specs=[vm] * 7,
        out_specs=vm,
    )(x_cm,
      to_wmat(w1), g1.reshape(C, 1).astype(jnp.float32), b1.reshape(C, 1).astype(jnp.float32),
      to_wmat(w2), g2.reshape(C, 1).astype(jnp.float32), b2.reshape(C, 1).astype(jnp.float32))

    return jnp.transpose(out_cm.reshape(C, N, H, W), (1, 0, 2, 3))


# --------------------- independent pure-JAX reference --------------------------
# Same math as PyTorch (reflect-pad conv, training-mode BN, LeakyReLU 0.2,
# residual add); the conv dot uses the same bf16-in/f32-accumulate precision as
# the kernel's MXU matmul so the comparison tolerance can stay tight.

def resblock_reference(x_nchw, w1, g1, b1, w2, g2, b2):
    N, C, H, W = x_nchw.shape
    x = jnp.transpose(x_nchw, (0, 2, 3, 1)).astype(jnp.float32)    # NHWC

    def block(inp, w, g, b):
        xp = jnp.pad(inp, ((0, 0), (1, 1), (1, 1), (0, 0)), mode="reflect")
        cols = [xp[:, dy:dy + H, dx:dx + W, :] for dy in range(3) for dx in range(3)]
        patches = jnp.concatenate(cols, axis=-1).reshape(N * H * W, 9 * C)
        w_mat = jnp.transpose(w, (2, 3, 1, 0)).reshape(9 * C, C)
        y = jnp.dot(patches.astype(jnp.bfloat16), w_mat.astype(jnp.bfloat16),
                    preferred_element_type=jnp.float32).reshape(N, H, W, C)
        mean = jnp.mean(y, axis=(0, 1, 2), keepdims=True)
        var = jnp.mean((y - mean) ** 2, axis=(0, 1, 2), keepdims=True)
        out = (y - mean) * lax.rsqrt(var + EPS) * g.reshape(1, 1, 1, C) + b.reshape(1, 1, 1, C)
        return jnp.where(out > 0, out, NEG_SLOPE * out)

    h = block(x, w1, g1, b1)
    h = block(h, w2, g2, b2)
    return jnp.transpose(x + h, (0, 3, 1, 2)).astype(x_nchw.dtype)


# ----------------------------------- main ---------------------------------------

if __name__ == "__main__":
    N, C, H, W = 2, 8, 16, 16
    key = jax.random.PRNGKey(0)
    kx, kw1, kw2, kg1, kb1, kg2, kb2 = jax.random.split(key, 7)

    x = jax.random.normal(kx, (N, C, H, W), jnp.float32)
    # Conv2d weights (bias=False): deterministic synthetic init.
    w1 = jax.random.normal(kw1, (C, C, 3, 3), jnp.float32) * 0.1
    w2 = jax.random.normal(kw2, (C, C, 3, 3), jnp.float32) * 0.1
    # BatchNorm affine params (PyTorch default gamma=1, beta=0; perturbed
    # deterministically so the affine path is exercised).
    g1 = 1.0 + 0.01 * jax.random.normal(kg1, (C,), jnp.float32)
    b1 = 0.01 * jax.random.normal(kb1, (C,), jnp.float32)
    g2 = 1.0 + 0.01 * jax.random.normal(kg2, (C,), jnp.float32)
    b2 = 0.01 * jax.random.normal(kb2, (C,), jnp.float32)

    out = jax.block_until_ready(resblock_forward(x, w1, g1, b1, w2, g2, b2))
    ref = jax.block_until_ready(resblock_reference(x, w1, g1, b1, w2, g2, b2))

    assert out.shape == (N, C, H, W)
    max_err = float(jnp.max(jnp.abs(out - ref)))
    assert jnp.allclose(out, ref, atol=1e-3, rtol=1e-3), f"max abs err {max_err}"

    print("KERNEL_OK")
</pallas_src>

<mosaic_0001>
module attributes {stable_mosaic.version = 11 : i64} {
  func.func @_resblock_kernel(%arg0: memref<8x512xf32, #tpu.memory_space<vmem>>, %arg1: memref<8x72xbf16, #tpu.memory_space<vmem>>, %arg2: memref<8x1xf32, #tpu.memory_space<vmem>>, %arg3: memref<8x1xf32, #tpu.memory_space<vmem>>, %arg4: memref<8x72xbf16, #tpu.memory_space<vmem>>, %arg5: memref<8x1xf32, #tpu.memory_space<vmem>>, %arg6: memref<8x1xf32, #tpu.memory_space<vmem>>, %arg7: memref<8x512xf32, #tpu.memory_space<vmem>>) attributes {dimension_semantics = [], scalar_prefetch = 0 : i64, scratch_operands = 0 : i64, tpu.core_type = #tpu.core_type<tc>} {
    %c0 = arith.constant 0 : index
    %c0_0 = arith.constant 0 : index
    %0 = vector.load %arg0[%c0, %c0_0] : memref<8x512xf32, #tpu.memory_space<vmem>>, vector<8x512xf32>
    %1 = tpu.iota {dimensions = array<i32: 1>} : vector<1x512xi32>
    %c15_i32 = arith.constant 15 : i32
    %2 = vector.broadcast %c15_i32 : i32 to vector<1x512xi32>
    %3 = arith.andi %1, %2 : vector<1x512xi32>
    %c4_i32 = arith.constant 4 : i32
    %4 = vector.broadcast %c4_i32 : i32 to vector<1x512xi32>
    %5 = arith.shrsi %1, %4 : vector<1x512xi32>
    %c15_i32_1 = arith.constant 15 : i32
    %6 = vector.broadcast %c15_i32_1 : i32 to vector<1x512xi32>
    %7 = arith.andi %5, %6 : vector<1x512xi32>
    %c0_i32 = arith.constant 0 : i32
    %8 = vector.broadcast %c0_i32 : i32 to vector<1x512xi32>
    %9 = arith.cmpi eq, %7, %8 : vector<1x512xi32>
    %c15_i32_2 = arith.constant 15 : i32
    %10 = vector.broadcast %c15_i32_2 : i32 to vector<1x512xi32>
    %11 = arith.cmpi eq, %7, %10 : vector<1x512xi32>
    %c0_i32_3 = arith.constant 0 : i32
    %12 = vector.broadcast %c0_i32_3 : i32 to vector<1x512xi32>
    %13 = arith.cmpi eq, %3, %12 : vector<1x512xi32>
    %c15_i32_4 = arith.constant 15 : i32
    %14 = vector.broadcast %c15_i32_4 : i32 to vector<1x512xi32>
    %15 = arith.cmpi eq, %3, %14 : vector<1x512xi32>
    %c0_5 = arith.constant 0 : index
    %c0_6 = arith.constant 0 : index
    %16 = vector.load %arg1[%c0_5, %c0_6] : memref<8x72xbf16, #tpu.memory_space<vmem>>, vector<8x72xbf16>
    %c0_7 = arith.constant 0 : index
    %c0_8 = arith.constant 0 : index
    %17 = vector.load %arg2[%c0_7, %c0_8] : memref<8x1xf32, #tpu.memory_space<vmem>>, vector<8x1xf32>
    %c0_9 = arith.constant 0 : index
    %c0_10 = arith.constant 0 : index
    %18 = vector.load %arg3[%c0_9, %c0_10] : memref<8x1xf32, #tpu.memory_space<vmem>>, vector<8x1xf32>
    %c16_i32 = arith.constant 16 : i32
    %19 = tpu.dynamic_rotate %0 by %c16_i32 dim 1 : vector<8x512xf32>, i32 -> vector<8x512xf32>
    %c496_i32 = arith.constant 496 : i32
    %20 = tpu.dynamic_rotate %0 by %c496_i32 dim 1 : vector<8x512xf32>, i32 -> vector<8x512xf32>
    %21 = vector.shape_cast %9 : vector<1x512xi1> to vector<1x512xi1>
    %22 = vector.broadcast %21 : vector<1x512xi1> to vector<8x512xi1>
    %23 = arith.select %22, %20, %19 : vector<8x512xi1>, vector<8x512xf32>
    %24 = vector.shape_cast %11 : vector<1x512xi1> to vector<1x512xi1>
    %25 = vector.broadcast %24 : vector<1x512xi1> to vector<8x512xi1>
    %26 = arith.select %25, %19, %20 : vector<8x512xi1>, vector<8x512xf32>
    %c1_i32 = arith.constant 1 : i32
    %27 = tpu.dynamic_rotate %23 by %c1_i32 dim 1 : vector<8x512xf32>, i32 -> vector<8x512xf32>
    %c511_i32 = arith.constant 511 : i32
    %28 = tpu.dynamic_rotate %23 by %c511_i32 dim 1 : vector<8x512xf32>, i32 -> vector<8x512xf32>
    %29 = vector.shape_cast %13 : vector<1x512xi1> to vector<1x512xi1>
    %30 = vector.broadcast %29 : vector<1x512xi1> to vector<8x512xi1>
    %31 = arith.select %30, %28, %27 : vector<8x512xi1>, vector<8x512xf32>
    %32 = vector.shape_cast %15 : vector<1x512xi1> to vector<1x512xi1>
    %33 = vector.broadcast %32 : vector<1x512xi1> to vector<8x512xi1>
    %34 = arith.select %33, %27, %28 : vector<8x512xi1>, vector<8x512xf32>
    %35 = tpu.concatenate %31, %23, %34 in 0 : vector<8x512xf32>, vector<8x512xf32>, vector<8x512xf32> -> vector<24x512xf32>
    %36 = arith.truncf %35 : vector<24x512xf32> to vector<24x512xbf16>
    %37 = vector.extract_strided_slice %16 {offsets = [0, 0], sizes = [8, 24], strides = [1, 1]} : vector<8x72xbf16> to vector<8x24xbf16>
    %cst = arith.constant dense<0.000000e+00> : vector<8x512xf32>
    %38 = tpu.matmul %37, %36, %cst {dimension_numbers = #tpu.dot_dimension_numbers<[1], [0], [0], [1], [0, 0, 1, 1], [], []>} : vector<8x24xbf16>, vector<24x512xbf16>, vector<8x512xf32> -> vector<8x512xf32>
    %c1_i32_11 = arith.constant 1 : i32
    %39 = tpu.dynamic_rotate %0 by %c1_i32_11 dim 1 : vector<8x512xf32>, i32 -> vector<8x512xf32>
    %c511_i32_12 = arith.constant 511 : i32
    %40 = tpu.dynamic_rotate %0 by %c511_i32_12 dim 1 : vector<8x512xf32>, i32 -> vector<8x512xf32>
    %41 = vector.shape_cast %13 : vector<1x512xi1> to vector<1x512xi1>
    %42 = vector.broadcast %41 : vector<1x512xi1> to vector<8x512xi1>
    %43 = arith.select %42, %40, %39 : vector<8x512xi1>, vector<8x512xf32>
    %44 = vector.shape_cast %15 : vector<1x512xi1> to vector<1x512xi1>
    %45 = vector.broadcast %44 : vector<1x512xi1> to vector<8x512xi1>
    %46 = arith.select %45, %39, %40 : vector<8x512xi1>, vector<8x512xf32>
    %47 = tpu.concatenate %43, %0, %46 in 0 : vector<8x512xf32>, vector<8x512xf32>, vector<8x512xf32> -> vector<24x512xf32>
    %48 = arith.truncf %47 : vector<24x512xf32> to vector<24x512xbf16>
    %49 = vector.extract_strided_slice %16 {offsets = [0, 24], sizes = [8, 24], strides = [1, 1]} : vector<8x72xbf16> to vector<8x24xbf16>
    %cst_13 = arith.constant dense<0.000000e+00> : vector<8x512xf32>
    %50 = tpu.matmul %49, %48, %cst_13 {dimension_numbers = #tpu.dot_dimension_numbers<[1], [0], [0], [1], [0, 0, 1, 1], [], []>} : vector<8x24xbf16>, vector<24x512xbf16>, vector<8x512xf32> -> vector<8x512xf32>
    %51 = arith.addf %38, %50 : vector<8x512xf32>
    %c1_i32_14 = arith.constant 1 : i32
    %52 = tpu.dynamic_rotate %26 by %c1_i32_14 dim 1 : vector<8x512xf32>, i32 -> vector<8x512xf32>
    %c511_i32_15 = arith.constant 511 : i32
    %53 = tpu.dynamic_rotate %26 by %c511_i32_15 dim 1 : vector<8x512xf32>, i32 -> vector<8x512xf32>
    %54 = vector.shape_cast %13 : vector<1x512xi1> to vector<1x512xi1>
    %55 = vector.broadcast %54 : vector<1x512xi1> to vector<8x512xi1>
    %56 = arith.select %55, %53, %52 : vector<8x512xi1>, vector<8x512xf32>
    %57 = vector.shape_cast %15 : vector<1x512xi1> to vector<1x512xi1>
    %58 = vector.broadcast %57 : vector<1x512xi1> to vector<8x512xi1>
    %59 = arith.select %58, %52, %53 : vector<8x512xi1>, vector<8x512xf32>
    %60 = tpu.concatenate %56, %26, %59 in 0 : vector<8x512xf32>, vector<8x512xf32>, vector<8x512xf32> -> vector<24x512xf32>
    %61 = arith.truncf %60 : vector<24x512xf32> to vector<24x512xbf16>
    %62 = vector.extract_strided_slice %16 {offsets = [0, 48], sizes = [8, 24], strides = [1, 1]} : vector<8x72xbf16> to vector<8x24xbf16>
    %cst_16 = arith.constant dense<0.000000e+00> : vector<8x512xf32>
    %63 = tpu.matmul %62, %61, %cst_16 {dimension_numbers = #tpu.dot_dimension_numbers<[1], [0], [0], [1], [0, 0, 1, 1], [], []>} : vector<8x24xbf16>, vector<24x512xbf16>, vector<8x512xf32> -> vector<8x512xf32>
    %64 = arith.addf %51, %63 : vector<8x512xf32>
    %cst_17 = arith.constant dense<0.000000e+00> : vector<8xf32>
    %65 = vector.multi_reduction <add>, %64, %cst_17 [1] : vector<8x512xf32> to vector<8xf32>
    %66 = vector.shape_cast %65 : vector<8xf32> to vector<8x1xf32>
    %cst_18 = arith.constant 0.001953125 : f32
    %67 = vector.broadcast %cst_18 : f32 to vector<8x1xf32>
    %68 = arith.mulf %66, %67 : vector<8x1xf32>
    %69 = vector.broadcast %68 : vector<8x1xf32> to vector<8x512xf32>
    %70 = arith.subf %64, %69 : vector<8x512xf32>
    %71 = arith.mulf %70, %70 : vector<8x512xf32>
    %cst_19 = arith.constant dense<0.000000e+00> : vector<8xf32>
    %72 = vector.multi_reduction <add>, %71, %cst_19 [1] : vector<8x512xf32> to vector<8xf32>
    %73 = vector.shape_cast %72 : vector<8xf32> to vector<8x1xf32>
    %cst_20 = arith.constant 0.001953125 : f32
    %74 = vector.broadcast %cst_20 : f32 to vector<8x1xf32>
    %75 = arith.mulf %73, %74 : vector<8x1xf32>
    %cst_21 = arith.constant 9.99999974E-6 : f32
    %76 = vector.broadcast %cst_21 : f32 to vector<8x1xf32>
    %77 = arith.addf %75, %76 : vector<8x1xf32>
    %78 = math.rsqrt %77 : vector<8x1xf32>
    %79 = arith.mulf %17, %78 : vector<8x1xf32>
    %80 = vector.broadcast %79 : vector<8x1xf32> to vector<8x512xf32>
    %81 = arith.mulf %70, %80 : vector<8x512xf32>
    %82 = vector.broadcast %18 : vector<8x1xf32> to vector<8x512xf32>
    %83 = arith.addf %81, %82 : vector<8x512xf32>
    %cst_22 = arith.constant 0.000000e+00 : f32
    %84 = vector.broadcast %cst_22 : f32 to vector<8x512xf32>
    %85 = arith.cmpf ogt, %83, %84 : vector<8x512xf32>
    %cst_23 = arith.constant 2.000000e-01 : f32
    %86 = vector.broadcast %cst_23 : f32 to vector<8x512xf32>
    %87 = arith.mulf %86, %83 : vector<8x512xf32>
    %88 = arith.select %85, %83, %87 : vector<8x512xi1>, vector<8x512xf32>
    %c0_24 = arith.constant 0 : index
    %c0_25 = arith.constant 0 : index
    %89 = vector.load %arg4[%c0_24, %c0_25] : memref<8x72xbf16, #tpu.memory_space<vmem>>, vector<8x72xbf16>
    %c0_26 = arith.constant 0 : index
    %c0_27 = arith.constant 0 : index
    %90 = vector.load %arg5[%c0_26, %c0_27] : memref<8x1xf32, #tpu.memory_space<vmem>>, vector<8x1xf32>
    %c0_28 = arith.constant 0 : index
    %c0_29 = arith.constant 0 : index
    %91 = vector.load %arg6[%c0_28, %c0_29] : memref<8x1xf32, #tpu.memory_space<vmem>>, vector<8x1xf32>
    %c16_i32_30 = arith.constant 16 : i32
    %92 = tpu.dynamic_rotate %88 by %c16_i32_30 dim 1 : vector<8x512xf32>, i32 -> vector<8x512xf32>
    %c496_i32_31 = arith.constant 496 : i32
    %93 = tpu.dynamic_rotate %88 by %c496_i32_31 dim 1 : vector<8x512xf32>, i32 -> vector<8x512xf32>
    %94 = vector.shape_cast %9 : vector<1x512xi1> to vector<1x512xi1>
    %95 = vector.broadcast %94 : vector<1x512xi1> to vector<8x512xi1>
    %96 = arith.select %95, %93, %92 : vector<8x512xi1>, vector<8x512xf32>
    %97 = vector.shape_cast %11 : vector<1x512xi1> to vector<1x512xi1>
    %98 = vector.broadcast %97 : vector<1x512xi1> to vector<8x512xi1>
    %99 = arith.select %98, %92, %93 : vector<8x512xi1>, vector<8x512xf32>
    %c1_i32_32 = arith.constant 1 : i32
    %100 = tpu.dynamic_rotate %96 by %c1_i32_32 dim 1 : vector<8x512xf32>, i32 -> vector<8x512xf32>
    %c511_i32_33 = arith.constant 511 : i32
    %101 = tpu.dynamic_rotate %96 by %c511_i32_33 dim 1 : vector<8x512xf32>, i32 -> vector<8x512xf32>
    %102 = vector.shape_cast %13 : vector<1x512xi1> to vector<1x512xi1>
    %103 = vector.broadcast %102 : vector<1x512xi1> to vector<8x512xi1>
    %104 = arith.select %103, %101, %100 : vector<8x512xi1>, vector<8x512xf32>
    %105 = vector.shape_cast %15 : vector<1x512xi1> to vector<1x512xi1>
    %106 = vector.broadcast %105 : vector<1x512xi1> to vector<8x512xi1>
    %107 = arith.select %106, %100, %101 : vector<8x512xi1>, vector<8x512xf32>
    %108 = tpu.concatenate %104, %96, %107 in 0 : vector<8x512xf32>, vector<8x512xf32>, vector<8x512xf32> -> vector<24x512xf32>
    %109 = arith.truncf %108 : vector<24x512xf32> to vector<24x512xbf16>
    %110 = vector.extract_strided_slice %89 {offsets = [0, 0], sizes = [8, 24], strides = [1, 1]} : vector<8x72xbf16> to vector<8x24xbf16>
    %cst_34 = arith.constant dense<0.000000e+00> : vector<8x512xf32>
    %111 = tpu.matmul %110, %109, %cst_34 {dimension_numbers = #tpu.dot_dimension_numbers<[1], [0], [0], [1], [0, 0, 1, 1], [], []>} : vector<8x24xbf16>, vector<24x512xbf16>, vector<8x512xf32> -> vector<8x512xf32>
    %c1_i32_35 = arith.constant 1 : i32
    %112 = tpu.dynamic_rotate %88 by %c1_i32_35 dim 1 : vector<8x512xf32>, i32 -> vector<8x512xf32>
    %c511_i32_36 = arith.constant 511 : i32
    %113 = tpu.dynamic_rotate %88 by %c511_i32_36 dim 1 : vector<8x512xf32>, i32 -> vector<8x512xf32>
    %114 = vector.shape_cast %13 : vector<1x512xi1> to vector<1x512xi1>
    %115 = vector.broadcast %114 : vector<1x512xi1> to vector<8x512xi1>
    %116 = arith.select %115, %113, %112 : vector<8x512xi1>, vector<8x512xf32>
    %117 = vector.shape_cast %15 : vector<1x512xi1> to vector<1x512xi1>
    %118 = vector.broadcast %117 : vector<1x512xi1> to vector<8x512xi1>
    %119 = arith.select %118, %112, %113 : vector<8x512xi1>, vector<8x512xf32>
    %120 = tpu.concatenate %116, %88, %119 in 0 : vector<8x512xf32>, vector<8x512xf32>, vector<8x512xf32> -> vector<24x512xf32>
    %121 = arith.truncf %120 : vector<24x512xf32> to vector<24x512xbf16>
    %122 = vector.extract_strided_slice %89 {offsets = [0, 24], sizes = [8, 24], strides = [1, 1]} : vector<8x72xbf16> to vector<8x24xbf16>
    %cst_37 = arith.constant dense<0.000000e+00> : vector<8x512xf32>
    %123 = tpu.matmul %122, %121, %cst_37 {dimension_numbers = #tpu.dot_dimension_numbers<[1], [0], [0], [1], [0, 0, 1, 1], [], []>} : vector<8x24xbf16>, vector<24x512xbf16>, vector<8x512xf32> -> vector<8x512xf32>
    %124 = arith.addf %111, %123 : vector<8x512xf32>
    %c1_i32_38 = arith.constant 1 : i32
    %125 = tpu.dynamic_rotate %99 by %c1_i32_38 dim 1 : vector<8x512xf32>, i32 -> vector<8x512xf32>
    %c511_i32_39 = arith.constant 511 : i32
    %126 = tpu.dynamic_rotate %99 by %c511_i32_39 dim 1 : vector<8x512xf32>, i32 -> vector<8x512xf32>
    %127 = vector.shape_cast %13 : vector<1x512xi1> to vector<1x512xi1>
    %128 = vector.broadcast %127 : vector<1x512xi1> to vector<8x512xi1>
    %129 = arith.select %128, %126, %125 : vector<8x512xi1>, vector<8x512xf32>
    %130 = vector.shape_cast %15 : vector<1x512xi1> to vector<1x512xi1>
    %131 = vector.broadcast %130 : vector<1x512xi1> to vector<8x512xi1>
    %132 = arith.select %131, %125, %126 : vector<8x512xi1>, vector<8x512xf32>
    %133 = tpu.concatenate %129, %99, %132 in 0 : vector<8x512xf32>, vector<8x512xf32>, vector<8x512xf32> -> vector<24x512xf32>
    %134 = arith.truncf %133 : vector<24x512xf32> to vector<24x512xbf16>
    %135 = vector.extract_strided_slice %89 {offsets = [0, 48], sizes = [8, 24], strides = [1, 1]} : vector<8x72xbf16> to vector<8x24xbf16>
    %cst_40 = arith.constant dense<0.000000e+00> : vector<8x512xf32>
    %136 = tpu.matmul %135, %134, %cst_40 {dimension_numbers = #tpu.dot_dimension_numbers<[1], [0], [0], [1], [0, 0, 1, 1], [], []>} : vector<8x24xbf16>, vector<24x512xbf16>, vector<8x512xf32> -> vector<8x512xf32>
    %137 = arith.addf %124, %136 : vector<8x512xf32>
    %cst_41 = arith.constant dense<0.000000e+00> : vector<8xf32>
    %138 = vector.multi_reduction <add>, %137, %cst_41 [1] : vector<8x512xf32> to vector<8xf32>
    %139 = vector.shape_cast %138 : vector<8xf32> to vector<8x1xf32>
    %cst_42 = arith.constant 0.001953125 : f32
    %140 = vector.broadcast %cst_42 : f32 to vector<8x1xf32>
    %141 = arith.mulf %139, %140 : vector<8x1xf32>
    %142 = vector.broadcast %141 : vector<8x1xf32> to vector<8x512xf32>
    %143 = arith.subf %137, %142 : vector<8x512xf32>
    %144 = arith.mulf %143, %143 : vector<8x512xf32>
    %cst_43 = arith.constant dense<0.000000e+00> : vector<8xf32>
    %145 = vector.multi_reduction <add>, %144, %cst_43 [1] : vector<8x512xf32> to vector<8xf32>
    %146 = vector.shape_cast %145 : vector<8xf32> to vector<8x1xf32>
    %cst_44 = arith.constant 0.001953125 : f32
    %147 = vector.broadcast %cst_44 : f32 to vector<8x1xf32>
    %148 = arith.mulf %146, %147 : vector<8x1xf32>
    %cst_45 = arith.constant 9.99999974E-6 : f32
    %149 = vector.broadcast %cst_45 : f32 to vector<8x1xf32>
    %150 = arith.addf %148, %149 : vector<8x1xf32>
    %151 = math.rsqrt %150 : vector<8x1xf32>
    %152 = arith.mulf %90, %151 : vector<8x1xf32>
    %153 = vector.broadcast %152 : vector<8x1xf32> to vector<8x512xf32>
    %154 = arith.mulf %143, %153 : vector<8x512xf32>
    %155 = vector.broadcast %91 : vector<8x1xf32> to vector<8x512xf32>
    %156 = arith.addf %154, %155 : vector<8x512xf32>
    %cst_46 = arith.constant 0.000000e+00 : f32
    %157 = vector.broadcast %cst_46 : f32 to vector<8x512xf32>
    %158 = arith.cmpf ogt, %156, %157 : vector<8x512xf32>
    %cst_47 = arith.constant 2.000000e-01 : f32
    %159 = vector.broadcast %cst_47 : f32 to vector<8x512xf32>
    %160 = arith.mulf %159, %156 : vector<8x512xf32>
    %161 = arith.select %158, %156, %160 : vector<8x512xi1>, vector<8x512xf32>
    %162 = arith.addf %0, %161 : vector<8x512xf32>
    %c0_48 = arith.constant 0 : index
    %c0_49 = arith.constant 0 : index
    %163 = vector.load %arg7[%c0_48, %c0_49] : memref<8x512xf32, #tpu.memory_space<vmem>>, vector<8x512xf32>
    tpu.vector_store %arg7[%c0_48, %c0_49], %162 {strides = array<i32>} : memref<8x512xf32, #tpu.memory_space<vmem>>, vector<8x512xf32>,
    return
  }
}

</mosaic_0001>

<llo_original>
// kernel: tpu_custom_call.1
$region0: #{tpu_custom_call.1}
  #allocation0 [shape = 'u32[]', space=smem, size = 0x4, offset = 0x4, fixed_abs, tag = 'smem constant byte address 0x4 - core index']
  #allocation1 [shape = 'u32[144,128]{1,0:T(1,128)}', space=vmem, size = 0x12000, scoped, tag = 'internal scratch']
  %s0 = inlined_call_operand.vmem [shape: f32[8,512], index: 0, kind: input, shape index: {}]
  %s1 = inlined_call_operand.vmem [shape: bf16[8,72], index: 1, kind: input, shape index: {}]
  %s2 = inlined_call_operand.vmem [shape: f32[8,1], index: 2, kind: input, shape index: {}]
  %s3 = inlined_call_operand.vmem [shape: f32[8,1], index: 3, kind: input, shape index: {}]
  %s4 = inlined_call_operand.vmem [shape: bf16[8,72], index: 4, kind: input, shape index: {}]
  %s5 = inlined_call_operand.vmem [shape: f32[8,1], index: 5, kind: input, shape index: {}]
  %s6 = inlined_call_operand.vmem [shape: f32[8,1], index: 6, kind: input, shape index: {}]
  %s7 = inlined_call_operand.hbm [shape: f32[8,512], index: 7, kind: output, shape index: {}]
  %s8 = sld [smem:[#allocation0]]
  $region38: #{tpu_custom_call.1} parent=0
    _
  %s10 = ssub.s32 1, %s8
  %s11 = scalar_select 0, %s10, %s8
  $region1: #{tpu_custom_call.1} parent=0
    #allocation2 [shape = 'u8[16384]{0}', space=vmem, size = 0x4000, scoped, tag = 'output window, operand 0, single buffered']
    #allocation3 [shape = 's32[1]{0}', space=sflag, size = 0x4, scoped, tag = 'scoped memory for tpu_custom_call.1']
    %12 = vsyncpa [#allocation3], 0
    // Predicated region
    $region2: #{tpu_custom_call.1} parent=1 // pred_check
      _
    $region3: #{tpu_custom_call.1} parent=1 // pred_check_branch
      %14 = sbr.rel (0) target = $region5
    $region4: #{tpu_custom_call.1} parent=1 // pred_region
      _
    $region5: #{tpu_custom_call.1} parent=1 // pred_fallthru
      _
    // Predicated region
    $region6: #{tpu_custom_call.1} parent=1 // pred_check
      _
    $region7: #{tpu_custom_call.1} parent=1 // pred_check_branch
      %16 = sbr.rel (0) target = $region9
    $region8: #{tpu_custom_call.1} parent=1 // pred_region
      _
    $region9: #{tpu_custom_call.1} parent=1 // pred_fallthru
      _
    // Predicated region
    $region10: #{tpu_custom_call.1} parent=1 // pred_check
      _
    $region11: #{tpu_custom_call.1} parent=1 // pred_check_branch
      %18 = sbr.rel (0) target = $region13
    $region12: #{tpu_custom_call.1} parent=1 // pred_region
      _
    $region13: #{tpu_custom_call.1} parent=1 // pred_fallthru
      _
    // Predicated region
    $region14: #{tpu_custom_call.1} parent=1 // pred_check
      _
    $region15: #{tpu_custom_call.1} parent=1 // pred_check_branch
      %20 = sbr.rel (0) target = $region17
    $region16: #{tpu_custom_call.1} parent=1 // pred_region
      _
    $region17: #{tpu_custom_call.1} parent=1 // pred_fallthru
      _
    // Predicated region
    $region18: #{tpu_custom_call.1} parent=1 // pred_check
      _
    $region19: #{tpu_custom_call.1} parent=1 // pred_check_branch
      %22 = sbr.rel (0) target = $region21
    $region20: #{tpu_custom_call.1} parent=1 // pred_region
      _
    $region21: #{tpu_custom_call.1} parent=1 // pred_fallthru
      _
    // Predicated region
    $region22: #{tpu_custom_call.1} parent=1 // pred_check
      _
    $region23: #{tpu_custom_call.1} parent=1 // pred_check_branch
      %24 = sbr.rel (0) target = $region25
    $region24: #{tpu_custom_call.1} parent=1 // pred_region
      _
    $region25: #{tpu_custom_call.1} parent=1 // pred_fallthru
      _
    // Predicated region
    $region26: #{tpu_custom_call.1} parent=1 // pred_check
      _
    $region27: #{tpu_custom_call.1} parent=1 // pred_check_branch
      %26 = sbr.rel (0) target = $region29
    $region28: #{tpu_custom_call.1} parent=1 // pred_region
      _
    $region29: #{tpu_custom_call.1} parent=1 // pred_fallthru
      _
    %v28 = vld [vmem:[%s0] sm:$0xff]
    %v29 = vld [vmem:[%s0 + $0x8] sm:$0xff]
    %v30 = vld [vmem:[%s0 + $0x10] sm:$0xff]
    %v31 = vld [vmem:[%s0 + $0x18] sm:$0xff]
    %v32 = vlaneseq
    %v33 = vand.u32 %v32, 127
    %v34 = vadd.s32 %v33, 128
    %v35 = vadd.s32 %v33, 256
    %v36 = vadd.s32 %v33, 384
    %v37 = vand.u32 %v33, 15
    %v38 = vand.u32 %v34, 15
    %v39 = vand.u32 %v35, 15
    %v40 = vand.u32 %v36, 15
    %v41 = vshra.s32 %v33, 4
    %v42 = vshra.s32 %v34, 4
    %v43 = vshra.s32 %v35, 4
    %v44 = vshra.s32 %v36, 4
    %v45 = vand.u32 %v41, 15
    %v46 = vand.u32 %v42, 15
    %v47 = vand.u32 %v43, 15
    %v48 = vand.u32 %v44, 15
    %vm49 = vcmp.eq.s32.totalorder %v45, 0
    %vm50 = vcmp.eq.s32.totalorder %v46, 0
    %vm51 = vcmp.eq.s32.totalorder %v47, 0
    %vm52 = vcmp.eq.s32.totalorder %v48, 0
    %vm53 = vcmp.eq.s32.totalorder %v45, 15
    %vm54 = vcmp.eq.s32.totalorder %v46, 15
    %vm55 = vcmp.eq.s32.totalorder %v47, 15
    %vm56 = vcmp.eq.s32.totalorder %v48, 15
    %vm57 = vcmp.eq.s32.totalorder %v37, 0
    %vm58 = vcmp.eq.s32.totalorder %v38, 0
    %vm59 = vcmp.eq.s32.totalorder %v39, 0
    %vm60 = vcmp.eq.s32.totalorder %v40, 0
    %vm61 = vcmp.eq.s32.totalorder %v37, 15
    %vm62 = vcmp.eq.s32.totalorder %v38, 15
    %vm63 = vcmp.eq.s32.totalorder %v39, 15
    %vm64 = vcmp.eq.s32.totalorder %v40, 15
    %v65 = vld [vmem:[%s1] sm:$0xf]
    %v66 = vld [vmem:[%s2] sm:$0xff]
    %v67 = vld [vmem:[%s3] sm:$0xff]
    %68 = vrot.lane.b32.xlu0 %v28, 16
    %v69 = vpop.permute.xlu0 %68
    %70 = vrot.lane.b32.xlu0 %v29, 16
    %v71 = vpop.permute.xlu0 %70
    %72 = vrot.lane.b32.xlu0 %v30, 16
    %v73 = vpop.permute.xlu0 %72
    %74 = vrot.lane.b32.xlu0 %v31, 16
    %v75 = vpop.permute.xlu0 %74
    %vm76 = vcmp.lt.s32.totalorder %v33, 16
    %v77 = vsel %vm76, %v73, %v75
    %v78 = vsel %vm76, %v71, %v73
    %v79 = vsel %vm76, %v69, %v71
    %v80 = vsel %vm76, %v75, %v69
    %81 = vrot.lane.b32.xlu0 %v28, 112
    %v82 = vpop.permute.xlu0 %81
    %83 = vrot.lane.b32.xlu0 %v29, 112
    %v84 = vpop.permute.xlu0 %83
    %85 = vrot.lane.b32.xlu0 %v30, 112
    %v86 = vpop.permute.xlu0 %85
    %87 = vrot.lane.b32.xlu0 %v31, 112
    %v88 = vpop.permute.xlu0 %87
    %vm89 = vcmp.lt.s32.totalorder %v33, 112
    %v90 = vsel %vm89, %v86, %v88
    %v91 = vsel %vm89, %v84, %v86
    %v92 = vsel %vm89, %v82, %v84
    %v93 = vsel %vm89, %v88, %v82
    %v94 = vsel %vm49, 1, 0
    %v95 = vsel %vm50, 1, 0
    %v96 = vsel %vm51, 1, 0
    %v97 = vsel %vm52, 1, 0
    %vm98 = vcmp.eq.s32.totalorder %v94, 1
    %vm99 = vcmp.eq.s32.totalorder %v95, 1
    %vm100 = vcmp.eq.s32.totalorder %v96, 1
    %vm101 = vcmp.eq.s32.totalorder %v97, 1
    %v102 = vsel %vm98, %v92, %v80
    %v103 = vsel %vm99, %v91, %v79
    %v104 = vsel %vm100, %v90, %v78
    %v105 = vsel %vm101, %v93, %v77
    %v106 = vsel %vm53, 1, 0
    %v107 = vsel %vm54, 1, 0
    %v108 = vsel %vm55, 1, 0
    %v109 = vsel %vm56, 1, 0
    %vm110 = vcmp.eq.s32.totalorder %v106, 1
    %vm111 = vcmp.eq.s32.totalorder %v107, 1
    %vm112 = vcmp.eq.s32.totalorder %v108, 1
    %vm113 = vcmp.eq.s32.totalorder %v109, 1
    %v114 = vsel %vm110, %v80, %v92
    %v115 = vsel %vm111, %v79, %v91
    %v116 = vsel %vm112, %v78, %v90
    %v117 = vsel %vm113, %v77, %v93
    %118 = vrot.lane.b32.xlu0 %v102, 1
    %v119 = vpop.permute.xlu0 %118
    %120 = vrot.lane.b32.xlu0 %v103, 1
    %v121 = vpop.permute.xlu0 %120
    %122 = vrot.lane.b32.xlu0 %v104, 1
    %v123 = vpop.permute.xlu0 %122
    %124 = vrot.lane.b32.xlu0 %v105, 1
    %v125 = vpop.permute.xlu0 %124
    %vm126 = vcmp.lt.s32.totalorder %v33, 1
    %v127 = vsel %vm126, %v123, %v125
    %v128 = vsel %vm126, %v121, %v123
    %v129 = vsel %vm126, %v119, %v121
    %v130 = vsel %vm126, %v125, %v119
    %131 = vrot.lane.b32.xlu0 %v102, 127
    %v132 = vpop.permute.xlu0 %131
    %133 = vrot.lane.b32.xlu0 %v103, 127
    %v134 = vpop.permute.xlu0 %133
    %135 = vrot.lane.b32.xlu0 %v104, 127
    %v136 = vpop.permute.xlu0 %135
    %137 = vrot.lane.b32.xlu0 %v105, 127
    %v138 = vpop.permute.xlu0 %137
    %vm139 = vcmp.lt.s32.totalorder %v33, 127
    %v140 = vsel %vm139, %v136, %v138
    %v141 = vsel %vm139, %v134, %v136
    %v142 = vsel %vm139, %v132, %v134
    %v143 = vsel %vm139, %v138, %v132
    %v144 = vsel %vm57, 1, 0
    %v145 = vsel %vm58, 1, 0
    %v146 = vsel %vm59, 1, 0
    %v147 = vsel %vm60, 1, 0
    %vm148 = vcmp.eq.s32.totalorder %v144, 1
    %vm149 = vcmp.eq.s32.totalorder %v145, 1
    %vm150 = vcmp.eq.s32.totalorder %v146, 1
    %vm151 = vcmp.eq.s32.totalorder %v147, 1
    %v152 = vsel %vm148, %v142, %v130
    %v153 = vsel %vm149, %v141, %v129
    %v154 = vsel %vm150, %v140, %v128
    %v155 = vsel %vm151, %v143, %v127
    %v156 = vsel %vm61, 1, 0
    %v157 = vsel %vm62, 1, 0
    %v158 = vsel %vm63, 1, 0
    %v159 = vsel %vm64, 1, 0
    %vm160 = vcmp.eq.s32.totalorder %v156, 1
    %vm161 = vcmp.eq.s32.totalorder %v157, 1
    %vm162 = vcmp.eq.s32.totalorder %v158, 1
    %vm163 = vcmp.eq.s32.totalorder %v159, 1
    %v164 = vsel %vm160, %v130, %v142
    %v165 = vsel %vm161, %v129, %v141
    %v166 = vsel %vm162, %v128, %v140
    %v167 = vsel %vm163, %v127, %v143
    %v168 = vpack.c.bf16 %v102, %v152
    %v169 = vpack.c.bf16 %v103, %v153
    %v170 = vpack.c.bf16 %v104, %v154
    %v171 = vpack.c.bf16 %v105, %v155
    %v172 = vpack.c.bf16 %v164, %v164
    %v173 = vpack.c.bf16 %v165, %v165
    %v174 = vpack.c.bf16 %v166, %v166
    %v175 = vpack.c.bf16 %v167, %v167
    %176 = vrot.lane.b32.xlu0 %v28, 1
    %v177 = vpop.permute.xlu0 %176
    %178 = vrot.lane.b32.xlu0 %v29, 1
    %v179 = vpop.permute.xlu0 %178
    %180 = vrot.lane.b32.xlu0 %v30, 1
    %v181 = vpop.permute.xlu0 %180
    %182 = vrot.lane.b32.xlu0 %v31, 1
    %v183 = vpop.permute.xlu0 %182
    %v184 = vsel %vm126, %v181, %v183
    %v185 = vsel %vm126, %v179, %v181
    %v186 = vsel %vm126, %v177, %v179
    %v187 = vsel %vm126, %v183, %v177
    %188 = vrot.lane.b32.xlu0 %v28, 127
    %v189 = vpop.permute.xlu0 %188
    %190 = vrot.lane.b32.xlu0 %v29, 127
    %v191 = vpop.permute.xlu0 %190
    %192 = vrot.lane.b32.xlu0 %v30, 127
    %v193 = vpop.permute.xlu0 %192
    %194 = vrot.lane.b32.xlu0 %v31, 127
    %v195 = vpop.permute.xlu0 %194
    %v196 = vsel %vm139, %v193, %v195
    %v197 = vsel %vm139, %v191, %v193
    %v198 = vsel %vm139, %v189, %v191
    %v199 = vsel %vm139, %v195, %v189
    %v200 = vsel %vm148, %v198, %v187
    %v201 = vsel %vm149, %v197, %v186
    %v202 = vsel %vm150, %v196, %v185
    %v203 = vsel %vm151, %v199, %v184
    %v204 = vsel %vm160, %v187, %v198
    %v205 = vsel %vm161, %v186, %v197
    %v206 = vsel %vm162, %v185, %v196
    %v207 = vsel %vm163, %v184, %v199
    %v208 = vpack.c.bf16 %v28, %v200
    %v209 = vpack.c.bf16 %v29, %v201
    %v210 = vpack.c.bf16 %v30, %v202
    %v211 = vpack.c.bf16 %v31, %v203
    %v212 = vpack.c.bf16 %v204, %v204
    %v213 = vpack.c.bf16 %v205, %v205
    %v214 = vpack.c.bf16 %v206, %v206
    %v215 = vpack.c.bf16 %v207, %v207
    %v217 = vunpack.c.l.b16 %v65
    %v218 = vpack.c.b16 %v217, %v217
    %219 = vrot.lane.b32.xlu0 %v218, 104
    %v220 = vpop.permute.xlu0 %219
    %vm221 = vcmask 195584
    %v223 = vsel %vm221, %v220, 0
    %vm225 = vcmask 1043456
    %v227 = vsel %vm225, %v212, 0
    %v230 = vsel %vm225, %v213, 0
    %v233 = vsel %vm225, %v214, 0
    %v236 = vsel %vm225, %v215, 0
    %238 = vmatprep.subr.bf16.mxu0 %v209
    %239 = vmatpush1.bf16.msra.mxu0 %v208
    %240 = vmatprep.subr.bf16.mxu0 %v230
    %241 = vmatpush1.bf16.msra.mxu0 %v227
    %242 = vmatprep.subr.bf16.mxu0 0
    %243 = vmatpush1.bf16.msra.mxu0 0
    %244 = vmatprep.subr.bf16.mxu0 0
    %245 = vmatpush1.bf16.msra.mxu0 0
    %246 = vmatprep.subr.bf16.mxu0 0
    %247 = vmatpush1.bf16.msra.mxu0 0
    %248 = vmatprep.subr.bf16.mxu0 0
    %249 = vmatpush1.bf16.msra.mxu0 0
    %250 = vmatprep.subr.bf16.mxu0 0
    %251 = vmatpush1.bf16.msra.mxu0 0
    %252 = vmatprep.subr.bf16.mxu0 0
    %253 = vmatpush1.bf16.msra.mxu0 0
    %254 = vmatprep.subr.bf16.mxu0 0
    %255 = vmatpush1.bf16.msra.mxu0 0
    %256 = vmatprep.subr.bf16.mxu0 0
    %257 = vmatpush1.bf16.msra.mxu0 0
    %258 = vmatprep.subr.bf16.mxu0 0
    %259 = vmatpush1.bf16.msra.mxu0 0
    %260 = vmatprep.subr.bf16.mxu0 0
    %261 = vmatpush1.bf16.msra.mxu0 0
    %262 = vmatprep.subr.bf16.mxu0 0
    %263 = vmatpush1.bf16.msra.mxu0 0
    %264 = vmatprep.subr.bf16.mxu0 0
    %265 = vmatpush1.bf16.msra.mxu0 0
    %266 = vmatprep.subr.bf16.mxu0 0
    %267 = vmatpush1.bf16.msra.mxu0 0
    %268 = vmatprep.subr.bf16.mxu0 0
    %269 = vmatpush1.bf16.msra.mxu0 0
    %270 = vmatprep.mubr.bf16.mxu0 0
    %271 = vmatmul.mubr.bf16.gmra.mrb[0].mxu0 %v223
    %v272 = vpop.f32.mrb[0].mxu0
    %v273 = vadd.f32 0.0, %v272
    %v274 = vpop.f32.mrb[0].mxu0
    %v275 = vadd.f32 0.0, %v274
    %v276 = vpop.f32.mrb[0].mxu0
    %v277 = vpop.f32.mrb[0].mxu0
    %278 = vdwg.mxu0
    %279 = vmatprep.subr.bf16.mxu0 %v211
    %280 = vmatpush1.bf16.msra.mxu0 %v210
    %281 = vmatprep.subr.bf16.mxu0 %v236
    %282 = vmatpush1.bf16.msra.mxu0 %v233
    %283 = vmatprep.subr.bf16.mxu0 0
    %284 = vmatpush1.bf16.msra.mxu0 0
    %285 = vmatprep.subr.bf16.mxu0 0
    %286 = vmatpush1.bf16.msra.mxu0 0
    %287 = vmatprep.subr.bf16.mxu0 0
    %288 = vmatpush1.bf16.msra.mxu0 0
    %289 = vmatprep.subr.bf16.mxu0 0
    %290 = vmatpush1.bf16.msra.mxu0 0
    %291 = vmatprep.subr.bf16.mxu0 0
    %292 = vmatpush1.bf16.msra.mxu0 0
    %293 = vmatprep.subr.bf16.mxu0 0
    %294 = vmatpush1.bf16.msra.mxu0 0
    %295 = vmatprep.subr.bf16.mxu0 0
    %296 = vmatpush1.bf16.msra.mxu0 0
    %297 = vmatprep.subr.bf16.mxu0 0
    %298 = vmatpush1.bf16.msra.mxu0 0
    %299 = vmatprep.subr.bf16.mxu0 0
    %300 = vmatpush1.bf16.msra.mxu0 0
    %301 = vmatprep.subr.bf16.mxu0 0
    %302 = vmatpush1.bf16.msra.mxu0 0
    %303 = vmatprep.subr.bf16.mxu0 0
    %304 = vmatpush1.bf16.msra.mxu0 0
    %305 = vmatprep.subr.bf16.mxu0 0
    %306 = vmatpush1.bf16.msra.mxu0 0
    %307 = vmatprep.subr.bf16.mxu0 0
    %308 = vmatpush1.bf16.msra.mxu0 0
    %309 = vmatprep.subr.bf16.mxu0 0
    %310 = vmatpush1.bf16.msra.mxu0 0
    %311 = vmatprep.mubr.bf16.mxu0 0
    %312 = vmatmul.mubr.bf16.gmra.mrb[0].mxu0 %v223
    %v313 = vpop.f32.mrb[0].mxu0
    %v314 = vadd.f32 0.0, %v313
    %v315 = vpop.f32.mrb[0].mxu0
    %v316 = vadd.f32 0.0, %v315
    %v317 = vpop.f32.mrb[0].mxu0
    %v318 = vpop.f32.mrb[0].mxu0
    %319 = vdwg.mxu0
    %v321 = vsel %vm221, %v65, 0
    %v324 = vsel %vm225, %v172, 0
    %v327 = vsel %vm225, %v173, 0
    %v330 = vsel %vm225, %v174, 0
    %v333 = vsel %vm225, %v175, 0
    %335 = vmatprep.subr.bf16.mxu0 %v169
    %336 = vmatpush1.bf16.msra.mxu0 %v168
    %337 = vmatprep.subr.bf16.mxu0 %v327
    %338 = vmatpush1.bf16.msra.mxu0 %v324
    %339 = vmatprep.subr.bf16.mxu0 0
    %340 = vmatpush1.bf16.msra.mxu0 0
    %341 = vmatprep.subr.bf16.mxu0 0
    %342 = vmatpush1.bf16.msra.mxu0 0
    %343 = vmatprep.subr.bf16.mxu0 0
    %344 = vmatpush1.bf16.msra.mxu0 0
    %345 = vmatprep.subr.bf16.mxu0 0
    %346 = vmatpush1.bf16.msra.mxu0 0
    %347 = vmatprep.subr.bf16.mxu0 0
    %348 = vmatpush1.bf16.msra.mxu0 0
    %349 = vmatprep.subr.bf16.mxu0 0
    %350 = vmatpush1.bf16.msra.mxu0 0
    %351 = vmatprep.subr.bf16.mxu0 0
    %352 = vmatpush1.bf16.msra.mxu0 0
    %353 = vmatprep.subr.bf16.mxu0 0
    %354 = vmatpush1.bf16.msra.mxu0 0
    %355 = vmatprep.subr.bf16.mxu0 0
    %356 = vmatpush1.bf16.msra.mxu0 0
    %357 = vmatprep.subr.bf16.mxu0 0
    %358 = vmatpush1.bf16.msra.mxu0 0
    %359 = vmatprep.subr.bf16.mxu0 0
    %360 = vmatpush1.bf16.msra.mxu0 0
    %361 = vmatprep.subr.bf16.mxu0 0
    %362 = vmatpush1.bf16.msra.mxu0 0
    %363 = vmatprep.subr.bf16.mxu0 0
    %364 = vmatpush1.bf16.msra.mxu0 0
    %365 = vmatprep.subr.bf16.mxu0 0
    %366 = vmatpush1.bf16.msra.mxu0 0
    %367 = vmatprep.mubr.bf16.mxu0 0
    %368 = vmatmul.mubr.bf16.gmra.mrb[0].mxu0 %v321
    %v369 = vpop.f32.mrb[0].mxu0
    %v370 = vadd.f32 %v273, %v369
    %v371 = vpop.f32.mrb[0].mxu0
    %v372 = vadd.f32 %v275, %v371
    %v373 = vpop.f32.mrb[0].mxu0
    %v374 = vpop.f32.mrb[0].mxu0
    %375 = vdwg.mxu0
    %376 = vmatprep.subr.bf16.mxu0 %v171
    %377 = vmatpush1.bf16.msra.mxu0 %v170
    %378 = vmatprep.subr.bf16.mxu0 %v333
    %379 = vmatpush1.bf16.msra.mxu0 %v330
    %380 = vmatprep.subr.bf16.mxu0 0
    %381 = vmatpush1.bf16.msra.mxu0 0
    %382 = vmatprep.subr.bf16.mxu0 0
    %383 = vmatpush1.bf16.msra.mxu0 0
    %384 = vmatprep.subr.bf16.mxu0 0
    %385 = vmatpush1.bf16.msra.mxu0 0
    %386 = vmatprep.subr.bf16.mxu0 0
    %387 = vmatpush1.bf16.msra.mxu0 0
    %388 = vmatprep.subr.bf16.mxu0 0
    %389 = vmatpush1.bf16.msra.mxu0 0
    %390 = vmatprep.subr.bf16.mxu0 0
    %391 = vmatpush1.bf16.msra.mxu0 0
    %392 = vmatprep.subr.bf16.mxu0 0
    %393 = vmatpush1.bf16.msra.mxu0 0
    %394 = vmatprep.subr.bf16.mxu0 0
    %395 = vmatpush1.bf16.msra.mxu0 0
    %396 = vmatprep.subr.bf16.mxu0 0
    %397 = vmatpush1.bf16.msra.mxu0 0
    %398 = vmatprep.subr.bf16.mxu0 0
    %399 = vmatpush1.bf16.msra.mxu0 0
    %400 = vmatprep.subr.bf16.mxu0 0
    %401 = vmatpush1.bf16.msra.mxu0 0
    %402 = vmatprep.subr.bf16.mxu0 0
    %403 = vmatpush1.bf16.msra.mxu0 0
    %404 = vmatprep.subr.bf16.mxu0 0
    %405 = vmatpush1.bf16.msra.mxu0 0
    %406 = vmatprep.subr.bf16.mxu0 0
    %407 = vmatpush1.bf16.msra.mxu0 0
    %408 = vmatprep.mubr.bf16.mxu0 0
    %409 = vmatmul.mubr.bf16.gmra.mrb[0].mxu0 %v321
    %v410 = vpop.f32.mrb[0].mxu0
    %v411 = vadd.f32 %v314, %v410
    %v412 = vpop.f32.mrb[0].mxu0
    %v413 = vadd.f32 %v316, %v412
    %v414 = vpop.f32.mrb[0].mxu0
    %v415 = vpop.f32.mrb[0].mxu0
    %416 = vdwg.mxu0
    %417 = vrot.lane.b32.xlu0 %v114, 1
    %v418 = vpop.permute.xlu0 %417
    %419 = vrot.lane.b32.xlu0 %v115, 1
    %v420 = vpop.permute.xlu0 %419
    %421 = vrot.lane.b32.xlu0 %v116, 1
    %v422 = vpop.permute.xlu0 %421
    %423 = vrot.lane.b32.xlu0 %v117, 1
    %v424 = vpop.permute.xlu0 %423
    %v425 = vsel %vm126, %v422, %v424
    %v426 = vsel %vm126, %v420, %v422
    %v427 = vsel %vm126, %v418, %v420
    %v428 = vsel %vm126, %v424, %v418
    %429 = vrot.lane.b32.xlu0 %v114, 127
    %v430 = vpop.permute.xlu0 %429
    %431 = vrot.lane.b32.xlu0 %v115, 127
    %v432 = vpop.permute.xlu0 %431
    %433 = vrot.lane.b32.xlu0 %v116, 127
    %v434 = vpop.permute.xlu0 %433
    %435 = vrot.lane.b32.xlu0 %v117, 127
    %v436 = vpop.permute.xlu0 %435
    %v437 = vsel %vm139, %v434, %v436
    %v438 = vsel %vm139, %v432, %v434
    %v439 = vsel %vm139, %v430, %v432
    %v440 = vsel %vm139, %v436, %v430
    %v441 = vsel %vm148, %v439, %v428
    %v442 = vsel %vm149, %v438, %v427
    %v443 = vsel %vm150, %v437, %v426
    %v444 = vsel %vm151, %v440, %v425
    %v445 = vsel %vm160, %v428, %v439
    %v446 = vsel %vm161, %v427, %v438
    %v447 = vsel %vm162, %v426, %v437
    %v448 = vsel %vm163, %v425, %v440
    %v449 = vpack.c.bf16 %v114, %v441
    %v450 = vpack.c.bf16 %v115, %v442
    %v451 = vpack.c.bf16 %v116, %v443
    %v452 = vpack.c.bf16 %v117, %v444
    %v453 = vpack.c.bf16 %v445, %v445
    %v454 = vpack.c.bf16 %v446, %v446
    %v455 = vpack.c.bf16 %v447, %v447
    %v456 = vpack.c.bf16 %v448, %v448
    %457 = vrot.lane.b32.xlu0 %v218, 80
    %v458 = vpop.permute.xlu0 %457
    %v460 = vsel %vm221, %v458, 0
    %v463 = vsel %vm225, %v453, 0
    %v466 = vsel %vm225, %v454, 0
    %v469 = vsel %vm225, %v455, 0
    %v472 = vsel %vm225, %v456, 0
    %474 = vmatprep.subr.bf16.mxu0 %v450
    %475 = vmatpush1.bf16.msra.mxu0 %v449
    %476 = vmatprep.subr.bf16.mxu0 %v466
    %477 = vmatpush1.bf16.msra.mxu0 %v463
    %478 = vmatprep.subr.bf16.mxu0 0
    %479 = vmatpush1.bf16.msra.mxu0 0
    %480 = vmatprep.subr.bf16.mxu0 0
    %481 = vmatpush1.bf16.msra.mxu0 0
    %482 = vmatprep.subr.bf16.mxu0 0
    %483 = vmatpush1.bf16.msra.mxu0 0
    %484 = vmatprep.subr.bf16.mxu0 0
    %485 = vmatpush1.bf16.msra.mxu0 0
    %486 = vmatprep.subr.bf16.mxu0 0
    %487 = vmatpush1.bf16.msra.mxu0 0
    %488 = vmatprep.subr.bf16.mxu0 0
    %489 = vmatpush1.bf16.msra.mxu0 0
    %490 = vmatprep.subr.bf16.mxu0 0
    %491 = vmatpush1.bf16.msra.mxu0 0
    %492 = vmatprep.subr.bf16.mxu0 0
    %493 = vmatpush1.bf16.msra.mxu0 0
    %494 = vmatprep.subr.bf16.mxu0 0
    %495 = vmatpush1.bf16.msra.mxu0 0
    %496 = vmatprep.subr.bf16.mxu0 0
    %497 = vmatpush1.bf16.msra.mxu0 0
    %498 = vmatprep.subr.bf16.mxu0 0
    %499 = vmatpush1.bf16.msra.mxu0 0
    %500 = vmatprep.subr.bf16.mxu0 0
    %501 = vmatpush1.bf16.msra.mxu0 0
    %502 = vmatprep.subr.bf16.mxu0 0
    %503 = vmatpush1.bf16.msra.mxu0 0
    %504 = vmatprep.subr.bf16.mxu0 0
    %505 = vmatpush1.bf16.msra.mxu0 0
    %506 = vmatprep.mubr.bf16.mxu0 0
    %507 = vmatmul.mubr.bf16.gmra.mrb[0].mxu0 %v460
    %v508 = vpop.f32.mrb[0].mxu0
    %v509 = vadd.f32 0.0, %v508
    %v510 = vpop.f32.mrb[0].mxu0
    %v511 = vadd.f32 0.0, %v510
    %v512 = vpop.f32.mrb[0].mxu0
    %v513 = vpop.f32.mrb[0].mxu0
    %514 = vdwg.mxu0
    %515 = vmatprep.subr.bf16.mxu0 %v452
    %516 = vmatpush1.bf16.msra.mxu0 %v451
    %517 = vmatprep.subr.bf16.mxu0 %v472
    %518 = vmatpush1.bf16.msra.mxu0 %v469
    %519 = vmatprep.subr.bf16.mxu0 0
    %520 = vmatpush1.bf16.msra.mxu0 0
    %521 = vmatprep.subr.bf16.mxu0 0
    %522 = vmatpush1.bf16.msra.mxu0 0
    %523 = vmatprep.subr.bf16.mxu0 0
    %524 = vmatpush1.bf16.msra.mxu0 0
    %525 = vmatprep.subr.bf16.mxu0 0
    %526 = vmatpush1.bf16.msra.mxu0 0
    %527 = vmatprep.subr.bf16.mxu0 0
    %528 = vmatpush1.bf16.msra.mxu0 0
    %529 = vmatprep.subr.bf16.mxu0 0
    %530 = vmatpush1.bf16.msra.mxu0 0
    %531 = vmatprep.subr.bf16.mxu0 0
    %532 = vmatpush1.bf16.msra.mxu0 0
    %533 = vmatprep.subr.bf16.mxu0 0
    %534 = vmatpush1.bf16.msra.mxu0 0
    %535 = vmatprep.subr.bf16.mxu0 0
    %536 = vmatpush1.bf16.msra.mxu0 0
    %537 = vmatprep.subr.bf16.mxu0 0
    %538 = vmatpush1.bf16.msra.mxu0 0
    %539 = vmatprep.subr.bf16.mxu0 0
    %540 = vmatpush1.bf16.msra.mxu0 0
    %541 = vmatprep.subr.bf16.mxu0 0
    %542 = vmatpush1.bf16.msra.mxu0 0
    %543 = vmatprep.subr.bf16.mxu0 0
    %544 = vmatpush1.bf16.msra.mxu0 0
    %545 = vmatprep.subr.bf16.mxu0 0
    %546 = vmatpush1.bf16.msra.mxu0 0
    %547 = vmatprep.mubr.bf16.mxu0 0
    %548 = vmatmul.mubr.bf16.gmra.mrb[0].mxu0 %v460
    %v549 = vpop.f32.mrb[0].mxu0
    %v550 = vadd.f32 0.0, %v549
    %v551 = vpop.f32.mrb[0].mxu0
    %v552 = vadd.f32 0.0, %v551
    %v553 = vpop.f32.mrb[0].mxu0
    %v554 = vpop.f32.mrb[0].mxu0
    %555 = vdwg.mxu0
    %v556 = vadd.f32 %v370, %v509
    %v557 = vadd.f32 %v372, %v511
    %v558 = vadd.f32 %v411, %v550
    %v559 = vadd.f32 %v413, %v552
    %v560 = vadd.f32 %v556, %v557
    %v561 = vadd.f32 %v560, %v558
    %v562 = vadd.f32 %v561, %v559
    %563 = vadd.xlane.f32.xlu0 %v562
    %v564 = vpop.xlane.xlu0 %563
    %v565 = vmul.f32 %v564, 0.001953125
    %v566 = vsub.f32 %v556, %v565
    %v567 = vsub.f32 %v557, %v565
    %v568 = vsub.f32 %v558, %v565
    %v569 = vsub.f32 %v559, %v565
    %v570 = vmul.f32 %v566, %v566
    %v571 = vmul.f32 %v567, %v567
    %v572 = vmul.f32 %v568, %v568
    %v573 = vmul.f32 %v569, %v569
    %v574 = vadd.f32 %v570, %v571
    %v575 = vadd.f32 %v574, %v572
    %v576 = vadd.f32 %v575, %v573
    %577 = vadd.xlane.f32.xlu0 %v576
    %v578 = vpop.xlane.xlu0 %577
    %v579 = vmul.f32 %v578, 0.001953125
    %v580 = vadd.f32 %v579, 1e-05
    %v581 = vrsqrt.pop %v580
    %v582 = vmul.f32 %v66, %v581
    %584 = vset.pattern.permute.xlu0 0
    %585 = vperm.xlu0 %584, %v582
    %v586 = vpop.permute.xlu0 %585
    %v588 = vmul.f32 %v566, %v586
    %v589 = vmul.f32 %v567, %v586
    %v590 = vmul.f32 %v568, %v586
    %v591 = vmul.f32 %v569, %v586
    %593 = vset.pattern.permute.xlu0 0
    %594 = vperm.xlu0 %593, %v67
    %v595 = vpop.permute.xlu0 %594
    %v597 = vadd.f32 %v588, %v595
    %v598 = vadd.f32 %v589, %v595
    %v599 = vadd.f32 %v590, %v595
    %v600 = vadd.f32 %v591, %v595
    %vm601 = vcmp.gt.f32.partialorder %v597, 0.0
    %vm602 = vcmp.gt.f32.partialorder %v598, 0.0
    %vm603 = vcmp.gt.f32.partialorder %v599, 0.0
    %vm604 = vcmp.gt.f32.partialorder %v600, 0.0
    %v605 = vmul.f32 %v597, 0.2
    %v606 = vmul.f32 %v598, 0.2
    %v607 = vmul.f32 %v599, 0.2
    %v608 = vmul.f32 %v600, 0.2
    %v609 = vsel %vm601, %v597, %v605
    %v610 = vsel %vm602, %v598, %v606
    %v611 = vsel %vm603, %v599, %v607
    %v612 = vsel %vm604, %v600, %v608
    %v613 = vld [vmem:[%s4] sm:$0xf]
    %v614 = vld [vmem:[%s5] sm:$0xff]
    %v615 = vld [vmem:[%s6] sm:$0xff]
    %616 = vrot.lane.b32.xlu0 %v609, 16
    %v617 = vpop.permute.xlu0 %616
    %618 = vrot.lane.b32.xlu0 %v610, 16
    %v619 = vpop.permute.xlu0 %618
    %620 = vrot.lane.b32.xlu0 %v611, 16
    %v621 = vpop.permute.xlu0 %620
    %622 = vrot.lane.b32.xlu0 %v612, 16
    %v623 = vpop.permute.xlu0 %622
    %v624 = vsel %vm76, %v621, %v623
    %v625 = vsel %vm76, %v619, %v621
    %v626 = vsel %vm76, %v617, %v619
    %v627 = vsel %vm76, %v623, %v617
    %628 = vrot.lane.b32.xlu0 %v609, 112
    %v629 = vpop.permute.xlu0 %628
    %630 = vrot.lane.b32.xlu0 %v610, 112
    %v631 = vpop.permute.xlu0 %630
    %632 = vrot.lane.b32.xlu0 %v611, 112
    %v633 = vpop.permute.xlu0 %632
    %634 = vrot.lane.b32.xlu0 %v612, 112
    %v635 = vpop.permute.xlu0 %634
    %v636 = vsel %vm89, %v633, %v635
    %v637 = vsel %vm89, %v631, %v633
    %v638 = vsel %vm89, %v629, %v631
    %v639 = vsel %vm89, %v635, %v629
    %v640 = vsel %vm98, %v638, %v627
    %v641 = vsel %vm99, %v637, %v626
    %v642 = vsel %vm100, %v636, %v625
    %v643 = vsel %vm101, %v639, %v624
    %v644 = vsel %vm110, %v627, %v638
    %v645 = vsel %vm111, %v626, %v637
    %v646 = vsel %vm112, %v625, %v636
    %v647 = vsel %vm113, %v624, %v639
    %648 = vrot.lane.b32.xlu0 %v640, 1
    %v649 = vpop.permute.xlu0 %648
    %650 = vrot.lane.b32.xlu0 %v641, 1
    %v651 = vpop.permute.xlu0 %650
    %652 = vrot.lane.b32.xlu0 %v642, 1
    %v653 = vpop.permute.xlu0 %652
    %654 = vrot.lane.b32.xlu0 %v643, 1
    %v655 = vpop.permute.xlu0 %654
    %v656 = vsel %vm126, %v653, %v655
    %v657 = vsel %vm126, %v651, %v653
    %v658 = vsel %vm126, %v649, %v651
    %v659 = vsel %vm126, %v655, %v649
    %660 = vrot.lane.b32.xlu0 %v640, 127
    %v661 = vpop.permute.xlu0 %660
    %662 = vrot.lane.b32.xlu0 %v641, 127
    %v663 = vpop.permute.xlu0 %662
    %664 = vrot.lane.b32.xlu0 %v642, 127
    %v665 = vpop.permute.xlu0 %664
    %666 = vrot.lane.b32.xlu0 %v643, 127
    %v667 = vpop.permute.xlu0 %666
    %v668 = vsel %vm139, %v665, %v667
    %v669 = vsel %vm139, %v663, %v665
    %v670 = vsel %vm139, %v661, %v663
    %v671 = vsel %vm139, %v667, %v661
    %v672 = vsel %vm148, %v670, %v659
    %v673 = vsel %vm149, %v669, %v658
    %v674 = vsel %vm150, %v668, %v657
    %v675 = vsel %vm151, %v671, %v656
    %v676 = vsel %vm160, %v659, %v670
    %v677 = vsel %vm161, %v658, %v669
    %v678 = vsel %vm162, %v657, %v668
    %v679 = vsel %vm163, %v656, %v671
    %v680 = vpack.c.bf16 %v640, %v672
    %v681 = vpack.c.bf16 %v641, %v673
    %v682 = vpack.c.bf16 %v642, %v674
    %v683 = vpack.c.bf16 %v643, %v675
    %v684 = vpack.c.bf16 %v676, %v676
    %v685 = vpack.c.bf16 %v677, %v677
    %v686 = vpack.c.bf16 %v678, %v678
    %v687 = vpack.c.bf16 %v679, %v679
    %688 = vrot.lane.b32.xlu0 %v609, 1
    %v689 = vpop.permute.xlu0 %688
    %690 = vrot.lane.b32.xlu0 %v610, 1
    %v691 = vpop.permute.xlu0 %690
    %692 = vrot.lane.b32.xlu0 %v611, 1
    %v693 = vpop.permute.xlu0 %692
    %694 = vrot.lane.b32.xlu0 %v612, 1
    %v695 = vpop.permute.xlu0 %694
    %v696 = vsel %vm126, %v693, %v695
    %v697 = vsel %vm126, %v691, %v693
    %v698 = vsel %vm126, %v689, %v691
    %v699 = vsel %vm126, %v695, %v689
    %700 = vrot.lane.b32.xlu0 %v609, 127
    %v701 = vpop.permute.xlu0 %700
    %702 = vrot.lane.b32.xlu0 %v610, 127
    %v703 = vpop.permute.xlu0 %702
    %704 = vrot.lane.b32.xlu0 %v611, 127
    %v705 = vpop.permute.xlu0 %704
    %706 = vrot.lane.b32.xlu0 %v612, 127
    %v707 = vpop.permute.xlu0 %706
    %v708 = vsel %vm139, %v705, %v707
    %v709 = vsel %vm139, %v703, %v705
    %v710 = vsel %vm139, %v701, %v703
    %v711 = vsel %vm139, %v707, %v701
    %v712 = vsel %vm148, %v710, %v699
    %v713 = vsel %vm149, %v709, %v698
    %v714 = vsel %vm150, %v708, %v697
    %v715 = vsel %vm151, %v711, %v696
    %v716 = vsel %vm160, %v699, %v710
    %v717 = vsel %vm161, %v698, %v709
    %v718 = vsel %vm162, %v697, %v708
    %v719 = vsel %vm163, %v696, %v711
    %v720 = vpack.c.bf16 %v609, %v712
    %v721 = vpack.c.bf16 %v610, %v713
    %v722 = vpack.c.bf16 %v611, %v714
    %v723 = vpack.c.bf16 %v612, %v715
    %v724 = vpack.c.bf16 %v716, %v716
    %v725 = vpack.c.bf16 %v717, %v717
    %v726 = vpack.c.bf16 %v718, %v718
    %v727 = vpack.c.bf16 %v719, %v719
    %v729 = vunpack.c.l.b16 %v613
    %v730 = vpack.c.b16 %v729, %v729
    %731 = vrot.lane.b32.xlu0 %v730, 104
    %v732 = vpop.permute.xlu0 %731
    %v734 = vsel %vm221, %v732, 0
    %v737 = vsel %vm225, %v724, 0
    %v740 = vsel %vm225, %v725, 0
    %v743 = vsel %vm225, %v726, 0
    %v746 = vsel %vm225, %v727, 0
    %748 = vmatprep.subr.bf16.mxu0 %v721
    %749 = vmatpush1.bf16.msra.mxu0 %v720
    %750 = vmatprep.subr.bf16.mxu0 %v740
    %751 = vmatpush1.bf16.msra.mxu0 %v737
    %752 = vmatprep.subr.bf16.mxu0 0
    %753 = vmatpush1.bf16.msra.mxu0 0
    %754 = vmatprep.subr.bf16.mxu0 0
    %755 = vmatpush1.bf16.msra.mxu0 0
    %756 = vmatprep.subr.bf16.mxu0 0
    %757 = vmatpush1.bf16.msra.mxu0 0
    %758 = vmatprep.subr.bf16.mxu0 0
    %759 = vmatpush1.bf16.msra.mxu0 0
    %760 = vmatprep.subr.bf16.mxu0 0
    %761 = vmatpush1.bf16.msra.mxu0 0
    %762 = vmatprep.subr.bf16.mxu0 0
    %763 = vmatpush1.bf16.msra.mxu0 0
    %764 = vmatprep.subr.bf16.mxu0 0
    %765 = vmatpush1.bf16.msra.mxu0 0
    %766 = vmatprep.subr.bf16.mxu0 0
    %767 = vmatpush1.bf16.msra.mxu0 0
    %768 = vmatprep.subr.bf16.mxu0 0
    %769 = vmatpush1.bf16.msra.mxu0 0
    %770 = vmatprep.subr.bf16.mxu0 0
    %771 = vmatpush1.bf16.msra.mxu0 0
    %772 = vmatprep.subr.bf16.mxu0 0
    %773 = vmatpush1.bf16.msra.mxu0 0
    %774 = vmatprep.subr.bf16.mxu0 0
    %775 = vmatpush1.bf16.msra.mxu0 0
    %776 = vmatprep.subr.bf16.mxu0 0
    %777 = vmatpush1.bf16.msra.mxu0 0
    %778 = vmatprep.subr.bf16.mxu0 0
    %779 = vmatpush1.bf16.msra.mxu0 0
    %780 = vmatprep.mubr.bf16.mxu0 0
    %781 = vmatmul.mubr.bf16.gmra.mrb[0].mxu0 %v734
    %v782 = vpop.f32.mrb[0].mxu0
    %v783 = vadd.f32 0.0, %v782
    %v784 = vpop.f32.mrb[0].mxu0
    %v785 = vadd.f32 0.0, %v784
    %v786 = vpop.f32.mrb[0].mxu0
    %v787 = vpop.f32.mrb[0].mxu0
    %788 = vdwg.mxu0
    %789 = vmatprep.subr.bf16.mxu0 %v723
    %790 = vmatpush1.bf16.msra.mxu0 %v722
    %791 = vmatprep.subr.bf16.mxu0 %v746
    %792 = vmatpush1.bf16.msra.mxu0 %v743
    %793 = vmatprep.subr.bf16.mxu0 0
    %794 = vmatpush1.bf16.msra.mxu0 0
    %795 = vmatprep.subr.bf16.mxu0 0
    %796 = vmatpush1.bf16.msra.mxu0 0
    %797 = vmatprep.subr.bf16.mxu0 0
    %798 = vmatpush1.bf16.msra.mxu0 0
    %799 = vmatprep.subr.bf16.mxu0 0
    %800 = vmatpush1.bf16.msra.mxu0 0
    %801 = vmatprep.subr.bf16.mxu0 0
    %802 = vmatpush1.bf16.msra.mxu0 0
    %803 = vmatprep.subr.bf16.mxu0 0
    %804 = vmatpush1.bf16.msra.mxu0 0
    %805 = vmatprep.subr.bf16.mxu0 0
    %806 = vmatpush1.bf16.msra.mxu0 0
    %807 = vmatprep.subr.bf16.mxu0 0
    %808 = vmatpush1.bf16.msra.mxu0 0
    %809 = vmatprep.subr.bf16.mxu0 0
    %810 = vmatpush1.bf16.msra.mxu0 0
    %811 = vmatprep.subr.bf16.mxu0 0
    %812 = vmatpush1.bf16.msra.mxu0 0
    %813 = vmatprep.subr.bf16.mxu0 0
    %814 = vmatpush1.bf16.msra.mxu0 0
    %815 = vmatprep.subr.bf16.mxu0 0
    %816 = vmatpush1.bf16.msra.mxu0 0
    %817 = vmatprep.subr.bf16.mxu0 0
    %818 = vmatpush1.bf16.msra.mxu0 0
    %819 = vmatprep.subr.bf16.mxu0 0
    %820 = vmatpush1.bf16.msra.mxu0 0
    %821 = vmatprep.mubr.bf16.mxu0 0
    %822 = vmatmul.mubr.bf16.gmra.mrb[0].mxu0 %v734
    %v823 = vpop.f32.mrb[0].mxu0
    %v824 = vadd.f32 0.0, %v823
    %v825 = vpop.f32.mrb[0].mxu0
    %v826 = vadd.f32 0.0, %v825
    %v827 = vpop.f32.mrb[0].mxu0
    %v828 = vpop.f32.mrb[0].mxu0
    %829 = vdwg.mxu0
    %v831 = vsel %vm221, %v613, 0
    %v834 = vsel %vm225, %v684, 0
    %v837 = vsel %vm225, %v685, 0
    %v840 = vsel %vm225, %v686, 0
    %v843 = vsel %vm225, %v687, 0
    %845 = vmatprep.subr.bf16.mxu0 %v681
    %846 = vmatpush1.bf16.msra.mxu0 %v680
    %847 = vmatprep.subr.bf16.mxu0 %v837
    %848 = vmatpush1.bf16.msra.mxu0 %v834
    %849 = vmatprep.subr.bf16.mxu0 0
    %850 = vmatpush1.bf16.msra.mxu0 0
    %851 = vmatprep.subr.bf16.mxu0 0
    %852 = vmatpush1.bf16.msra.mxu0 0
    %853 = vmatprep.subr.bf16.mxu0 0
    %854 = vmatpush1.bf16.msra.mxu0 0
    %855 = vmatprep.subr.bf16.mxu0 0
    %856 = vmatpush1.bf16.msra.mxu0 0
    %857 = vmatprep.subr.bf16.mxu0 0
    %858 = vmatpush1.bf16.msra.mxu0 0
    %859 = vmatprep.subr.bf16.mxu0 0
    %860 = vmatpush1.bf16.msra.mxu0 0
    %861 = vmatprep.subr.bf16.mxu0 0
    %862 = vmatpush1.bf16.msra.mxu0 0
    %863 = vmatprep.subr.bf16.mxu0 0
    %864 = vmatpush1.bf16.msra.mxu0 0
    %865 = vmatprep.subr.bf16.mxu0 0
    %866 = vmatpush1.bf16.msra.mxu0 0
    %867 = vmatprep.subr.bf16.mxu0 0
    %868 = vmatpush1.bf16.msra.mxu0 0
    %869 = vmatprep.subr.bf16.mxu0 0
    %870 = vmatpush1.bf16.msra.mxu0 0
    %871 = vmatprep.subr.bf16.mxu0 0
    %872 = vmatpush1.bf16.msra.mxu0 0
    %873 = vmatprep.subr.bf16.mxu0 0
    %874 = vmatpush1.bf16.msra.mxu0 0
    %875 = vmatprep.subr.bf16.mxu0 0
    %876 = vmatpush1.bf16.msra.mxu0 0
    %877 = vmatprep.mubr.bf16.mxu0 0
    %878 = vmatmul.mubr.bf16.gmra.mrb[0].mxu0 %v831
    %v879 = vpop.f32.mrb[0].mxu0
    %v880 = vadd.f32 %v783, %v879
    %v881 = vpop.f32.mrb[0].mxu0
    %v882 = vadd.f32 %v785, %v881
    %v883 = vpop.f32.mrb[0].mxu0
    %v884 = vpop.f32.mrb[0].mxu0
    %885 = vdwg.mxu0
    %886 = vmatprep.subr.bf16.mxu0 %v683
    %887 = vmatpush1.bf16.msra.mxu0 %v682
    %888 = vmatprep.subr.bf16.mxu0 %v843
    %889 = vmatpush1.bf16.msra.mxu0 %v840
    %890 = vmatprep.subr.bf16.mxu0 0
    %891 = vmatpush1.bf16.msra.mxu0 0
    %892 = vmatprep.subr.bf16.mxu0 0
    %893 = vmatpush1.bf16.msra.mxu0 0
    %894 = vmatprep.subr.bf16.mxu0 0
    %895 = vmatpush1.bf16.msra.mxu0 0
    %896 = vmatprep.subr.bf16.mxu0 0
    %897 = vmatpush1.bf16.msra.mxu0 0
    %898 = vmatprep.subr.bf16.mxu0 0
    %899 = vmatpush1.bf16.msra.mxu0 0
    %900 = vmatprep.subr.bf16.mxu0 0
    %901 = vmatpush1.bf16.msra.mxu0 0
    %902 = vmatprep.subr.bf16.mxu0 0
    %903 = vmatpush1.bf16.msra.mxu0 0
    %904 = vmatprep.subr.bf16.mxu0 0
    %905 = vmatpush1.bf16.msra.mxu0 0
    %906 = vmatprep.subr.bf16.mxu0 0
    %907 = vmatpush1.bf16.msra.mxu0 0
    %908 = vmatprep.subr.bf16.mxu0 0
    %909 = vmatpush1.bf16.msra.mxu0 0
    %910 = vmatprep.subr.bf16.mxu0 0
    %911 = vmatpush1.bf16.msra.mxu0 0
    %912 = vmatprep.subr.bf16.mxu0 0
    %913 = vmatpush1.bf16.msra.mxu0 0
    %914 = vmatprep.subr.bf16.mxu0 0
    %915 = vmatpush1.bf16.msra.mxu0 0
    %916 = vmatprep.subr.bf16.mxu0 0
    %917 = vmatpush1.bf16.msra.mxu0 0
    %918 = vmatprep.mubr.bf16.mxu0 0
    %919 = vmatmul.mubr.bf16.gmra.mrb[0].mxu0 %v831
    %v920 = vpop.f32.mrb[0].mxu0
    %v921 = vadd.f32 %v824, %v920
    %v922 = vpop.f32.mrb[0].mxu0
    %v923 = vadd.f32 %v826, %v922
    %v924 = vpop.f32.mrb[0].mxu0
    %v925 = vpop.f32.mrb[0].mxu0
    %926 = vdwg.mxu0
    %927 = vrot.lane.b32.xlu0 %v644, 1
    %v928 = vpop.permute.xlu0 %927
    %929 = vrot.lane.b32.xlu0 %v645, 1
    %v930 = vpop.permute.xlu0 %929
    %931 = vrot.lane.b32.xlu0 %v646, 1
    %v932 = vpop.permute.xlu0 %931
    %933 = vrot.lane.b32.xlu0 %v647, 1
    %v934 = vpop.permute.xlu0 %933
    %v935 = vsel %vm126, %v932, %v934
    %v936 = vsel %vm126, %v930, %v932
    %v937 = vsel %vm126, %v928, %v930
    %v938 = vsel %vm126, %v934, %v928
    %939 = vrot.lane.b32.xlu0 %v644, 127
    %v940 = vpop.permute.xlu0 %939
    %941 = vrot.lane.b32.xlu0 %v645, 127
    %v942 = vpop.permute.xlu0 %941
    %943 = vrot.lane.b32.xlu0 %v646, 127
    %v944 = vpop.permute.xlu0 %943
    %945 = vrot.lane.b32.xlu0 %v647, 127
    %v946 = vpop.permute.xlu0 %945
    %v947 = vsel %vm139, %v944, %v946
    %v948 = vsel %vm139, %v942, %v944
    %v949 = vsel %vm139, %v940, %v942
    %v950 = vsel %vm139, %v946, %v940
    %v951 = vsel %vm148, %v949, %v938
    %v952 = vsel %vm149, %v948, %v937
    %v953 = vsel %vm150, %v947, %v936
    %v954 = vsel %vm151, %v950, %v935
    %v955 = vsel %vm160, %v938, %v949
    %v956 = vsel %vm161, %v937, %v948
    %v957 = vsel %vm162, %v936, %v947
    %v958 = vsel %vm163, %v935, %v950
    %v959 = vpack.c.bf16 %v644, %v951
    %v960 = vpack.c.bf16 %v645, %v952
    %v961 = vpack.c.bf16 %v646, %v953
    %v962 = vpack.c.bf16 %v647, %v954
    %v963 = vpack.c.bf16 %v955, %v955
    %v964 = vpack.c.bf16 %v956, %v956
    %v965 = vpack.c.bf16 %v957, %v957
    %v966 = vpack.c.bf16 %v958, %v958
    %967 = vrot.lane.b32.xlu0 %v730, 80
    %v968 = vpop.permute.xlu0 %967
    %v970 = vsel %vm221, %v968, 0
    %v973 = vsel %vm225, %v963, 0
    %v976 = vsel %vm225, %v964, 0
    %v979 = vsel %vm225, %v965, 0
    %v982 = vsel %vm225, %v966, 0
    %984 = vmatprep.subr.bf16.mxu0 %v960
    %985 = vmatpush1.bf16.msra.mxu0 %v959
    %986 = vmatprep.subr.bf16.mxu0 %v976
    %987 = vmatpush1.bf16.msra.mxu0 %v973
    %988 = vmatprep.subr.bf16.mxu0 0
    %989 = vmatpush1.bf16.msra.mxu0 0
    %990 = vmatprep.subr.bf16.mxu0 0
    %991 = vmatpush1.bf16.msra.mxu0 0
    %992 = vmatprep.subr.bf16.mxu0 0
    %993 = vmatpush1.bf16.msra.mxu0 0
    %994 = vmatprep.subr.bf16.mxu0 0
    %995 = vmatpush1.bf16.msra.mxu0 0
    %996 = vmatprep.subr.bf16.mxu0 0
    %997 = vmatpush1.bf16.msra.mxu0 0
    %998 = vmatprep.subr.bf16.mxu0 0
    %999 = vmatpush1.bf16.msra.mxu0 0
    %1000 = vmatprep.subr.bf16.mxu0 0
    %1001 = vmatpush1.bf16.msra.mxu0 0
    %1002 = vmatprep.subr.bf16.mxu0 0
    %1003 = vmatpush1.bf16.msra.mxu0 0
    %1004 = vmatprep.subr.bf16.mxu0 0
    %1005 = vmatpush1.bf16.msra.mxu0 0
    %1006 = vmatprep.subr.bf16.mxu0 0
    %1007 = vmatpush1.bf16.msra.mxu0 0
    %1008 = vmatprep.subr.bf16.mxu0 0
    %1009 = vmatpush1.bf16.msra.mxu0 0
    %1010 = vmatprep.subr.bf16.mxu0 0
    %1011 = vmatpush1.bf16.msra.mxu0 0
    %1012 = vmatprep.subr.bf16.mxu0 0
    %1013 = vmatpush1.bf16.msra.mxu0 0
    %1014 = vmatprep.subr.bf16.mxu0 0
    %1015 = vmatpush1.bf16.msra.mxu0 0
    %1016 = vmatprep.mubr.bf16.mxu0 0
    %1017 = vmatmul.mubr.bf16.gmra.mrb[0].mxu0 %v970
    %v1018 = vpop.f32.mrb[0].mxu0
    %v1019 = vadd.f32 0.0, %v1018
    %v1020 = vpop.f32.mrb[0].mxu0
    %v1021 = vadd.f32 0.0, %v1020
    %v1022 = vpop.f32.mrb[0].mxu0
    %v1023 = vpop.f32.mrb[0].mxu0
    %1024 = vdwg.mxu0
    %1025 = vmatprep.subr.bf16.mxu0 %v962
    %1026 = vmatpush1.bf16.msra.mxu0 %v961
    %1027 = vmatprep.subr.bf16.mxu0 %v982
    %1028 = vmatpush1.bf16.msra.mxu0 %v979
    %1029 = vmatprep.subr.bf16.mxu0 0
    %1030 = vmatpush1.bf16.msra.mxu0 0
    %1031 = vmatprep.subr.bf16.mxu0 0
    %1032 = vmatpush1.bf16.msra.mxu0 0
    %1033 = vmatprep.subr.bf16.mxu0 0
    %1034 = vmatpush1.bf16.msra.mxu0 0
    %1035 = vmatprep.subr.bf16.mxu0 0
    %1036 = vmatpush1.bf16.msra.mxu0 0
    %1037 = vmatprep.subr.bf16.mxu0 0
    %1038 = vmatpush1.bf16.msra.mxu0 0
    %1039 = vmatprep.subr.bf16.mxu0 0
    %1040 = vmatpush1.bf16.msra.mxu0 0
    %1041 = vmatprep.subr.bf16.mxu0 0
    %1042 = vmatpush1.bf16.msra.mxu0 0
    %1043 = vmatprep.subr.bf16.mxu0 0
    %1044 = vmatpush1.bf16.msra.mxu0 0
    %1045 = vmatprep.subr.bf16.mxu0 0
    %1046 = vmatpush1.bf16.msra.mxu0 0
    %1047 = vmatprep.subr.bf16.mxu0 0
    %1048 = vmatpush1.bf16.msra.mxu0 0
    %1049 = vmatprep.subr.bf16.mxu0 0
    %1050 = vmatpush1.bf16.msra.mxu0 0
    %1051 = vmatprep.subr.bf16.mxu0 0
    %1052 = vmatpush1.bf16.msra.mxu0 0
    %1053 = vmatprep.subr.bf16.mxu0 0
    %1054 = vmatpush1.bf16.msra.mxu0 0
    %1055 = vmatprep.subr.bf16.mxu0 0
    %1056 = vmatpush1.bf16.msra.mxu0 0
    %1057 = vmatprep.mubr.bf16.mxu0 0
    %1058 = vmatmul.mubr.bf16.gmra.mrb[0].mxu0 %v970
    %v1059 = vpop.f32.mrb[0].mxu0
    %v1060 = vadd.f32 0.0, %v1059
    %v1061 = vpop.f32.mrb[0].mxu0
    %v1062 = vadd.f32 0.0, %v1061
    %v1063 = vpop.f32.mrb[0].mxu0
    %v1064 = vpop.f32.mrb[0].mxu0
    %1065 = vdwg.mxu0
    %v1066 = vadd.f32 %v880, %v1019
    %v1067 = vadd.f32 %v882, %v1021
    %v1068 = vadd.f32 %v921, %v1060
    %v1069 = vadd.f32 %v923, %v1062
    %v1070 = vadd.f32 %v1066, %v1067
    %v1071 = vadd.f32 %v1070, %v1068
    %v1072 = vadd.f32 %v1071, %v1069
    %1073 = vadd.xlane.f32.xlu0 %v1072
    %v1074 = vpop.xlane.xlu0 %1073
    %v1075 = vmul.f32 %v1074, 0.001953125
    %v1076 = vsub.f32 %v1066, %v1075
    %v1077 = vsub.f32 %v1067, %v1075
    %v1078 = vsub.f32 %v1068, %v1075
    %v1079 = vsub.f32 %v1069, %v1075
    %v1080 = vmul.f32 %v1076, %v1076
    %v1081 = vmul.f32 %v1077, %v1077
    %v1082 = vmul.f32 %v1078, %v1078
    %v1083 = vmul.f32 %v1079, %v1079
    %v1084 = vadd.f32 %v1080, %v1081
    %v1085 = vadd.f32 %v1084, %v1082
    %v1086 = vadd.f32 %v1085, %v1083
    %1087 = vadd.xlane.f32.xlu0 %v1086
    %v1088 = vpop.xlane.xlu0 %1087
    %v1089 = vmul.f32 %v1088, 0.001953125
    %v1090 = vadd.f32 %v1089, 1e-05
    %v1091 = vrsqrt.pop %v1090
    %v1092 = vmul.f32 %v614, %v1091
    %1094 = vset.pattern.permute.xlu0 0
    %1095 = vperm.xlu0 %1094, %v1092
    %v1096 = vpop.permute.xlu0 %1095
    %v1098 = vmul.f32 %v1076, %v1096
    %v1099 = vmul.f32 %v1077, %v1096
    %v1100 = vmul.f32 %v1078, %v1096
    %v1101 = vmul.f32 %v1079, %v1096
    %1103 = vset.pattern.permute.xlu0 0
    %1104 = vperm.xlu0 %1103, %v615
    %v1105 = vpop.permute.xlu0 %1104
    %v1107 = vadd.f32 %v1098, %v1105
    %v1108 = vadd.f32 %v1099, %v1105
    %v1109 = vadd.f32 %v1100, %v1105
    %v1110 = vadd.f32 %v1101, %v1105
    %vm1111 = vcmp.gt.f32.partialorder %v1107, 0.0
    %vm1112 = vcmp.gt.f32.partialorder %v1108, 0.0
    %vm1113 = vcmp.gt.f32.partialorder %v1109, 0.0
    %vm1114 = vcmp.gt.f32.partialorder %v1110, 0.0
    %v1115 = vmul.f32 %v1107, 0.2
    %v1116 = vmul.f32 %v1108, 0.2
    %v1117 = vmul.f32 %v1109, 0.2
    %v1118 = vmul.f32 %v1110, 0.2
    %v1119 = vsel %vm1111, %v1107, %v1115
    %v1120 = vsel %vm1112, %v1108, %v1116
    %v1121 = vsel %vm1113, %v1109, %v1117
    %v1122 = vsel %vm1114, %v1110, %v1118
    %v1123 = vadd.f32 %v28, %v1119
    %v1124 = vadd.f32 %v29, %v1120
    %v1125 = vadd.f32 %v30, %v1121
    %v1126 = vadd.f32 %v31, %v1122
    %1127 = vst [vmem:[#allocation2] sm:$0xff] %v1123
    %1128 = vst [vmem:[#allocation2 + $0x8] sm:$0xff] %v1124
    %1129 = vst [vmem:[#allocation2 + $0x10] sm:$0xff] %v1125
    %1130 = vst [vmem:[#allocation2 + $0x18] sm:$0xff] %v1126
    // Predicated region
    $region30: #{tpu_custom_call.1} parent=1 // pred_check
      _
    $region31: #{tpu_custom_call.1} parent=1 // pred_check_branch
      %1132 = sbr.rel (0) target = $region33
    $region32: #{tpu_custom_call.1} parent=1 // pred_region
      %s1134 = ssub.s32 512, 512
      %1135 = vsyncadd [#allocation3], %s1134
      %s1137 = sshll.u32 [#allocation2], 4
      %s1138 = int_to_ptr.vmem [resolvable:$true] %s1137
      %1140 = dma.vmem_to_hbm [thread:$0]  %s1138, 512, %s7, [#allocation3]
    $region33: #{tpu_custom_call.1} parent=1 // pred_fallthru
      _
    // Predicated region
    $region34: #{tpu_custom_call.1} parent=1 // pred_check
      _
    $region35: #{tpu_custom_call.1} parent=1 // pred_check_branch
      %1142 = sbr.rel (0) target = $region37
    $region36: #{tpu_custom_call.1} parent=1 // pred_region
      %1143 = dma.done [#allocation3], 512
    $region37: #{tpu_custom_call.1} parent=1 // pred_fallthru
      _
    %1144 = vsyncpa [#allocation3], 1

</llo_original>
